<compile_context>
chip_gen: v7x
topology: tpu7x:2x2x1
jax: 0.10.0
libtpu: 0.0.40
codegen_flags: <defaults>
</compile_context>

<pallas_src>
import jax
import jax.numpy as jnp
from jax.experimental import pallas as pl
from jax.experimental.pallas import tpu as pltpu


# -----------------------------------------------------------------------------
# Kernel A: ConvTranspose2d(kernel=2, stride=2) as ONE fused matmul
#   out[n, 2i+a, 2j+b, co] = sum_ci x[n, i, j, ci] * w[a, b, ci, co] + bias[co]
# -----------------------------------------------------------------------------
def _upconv2x2_kernel(x_ref, w_ref, b_ref, o_ref):
    # x_ref: (1, H, W, Cin); w_ref: (Cin, 4*Cout), columns ordered (a, b, co)
    # b_ref: (1, 4*Cout);    o_ref: (1, H, 2, W, 2*Cout)
    # o[0, i, a, j, b*Cout+co] == output pixel (2i+a, 2j+b), channel co, so the
    # wrapper recovers NHWC with a pure reshape (no HBM transpose).
    _, H, W, Cin = x_ref.shape
    c2 = o_ref.shape[-1]                       # 2 * Cout
    x = x_ref[0].reshape(H * W, Cin)
    # single matmul for all four (a, b) taps; f32 accumulation on the MXU
    y = jnp.dot(x, w_ref[...], preferred_element_type=jnp.float32) + b_ref[0]
    y = y.reshape(H, W, 2 * c2)                # minor dim unchanged -> cheap
    o_ref[0, :, 0, :, :] = y[:, :, :c2].astype(o_ref.dtype)   # a = 0 rows
    o_ref[0, :, 1, :, :] = y[:, :, c2:].astype(o_ref.dtype)   # a = 1 rows


def conv_transpose2x2_s2(x_nhwc, w4, bias4):
    """x: (N, H, W, Cin); w4: (Cin, 4*Cout) ordered (a,b,co); bias4: (4*Cout,)."""
    N, H, W, Cin = x_nhwc.shape
    Cout = w4.shape[-1] // 4
    out = pl.pallas_call(
        _upconv2x2_kernel,
        out_shape=jax.ShapeDtypeStruct((N, H, 2, W, 2 * Cout), x_nhwc.dtype),
        grid_spec=pltpu.PrefetchScalarGridSpec(
            num_scalar_prefetch=0,
            grid=(N,),
            in_specs=[
                pl.BlockSpec((1, H, W, Cin), lambda n: (n, 0, 0, 0)),
                pl.BlockSpec((Cin, 4 * Cout), lambda n: (0, 0)),
                pl.BlockSpec((1, 4 * Cout), lambda n: (0, 0)),
            ],
            out_specs=pl.BlockSpec((1, H, 2, W, 2 * Cout),
                                   lambda n: (n, 0, 0, 0, 0)),
        ),
        compiler_params=pltpu.CompilerParams(dimension_semantics=("parallel",)),
    )(x_nhwc, w4, bias4.reshape(1, 4 * Cout))
    # pure reshape: (N, H, 2, W, 2*Cout) -> (N, 2H, 2W, Cout), no data movement
    return out.reshape(N, 2 * H, 2 * W, Cout)


# -----------------------------------------------------------------------------
# Kernel B: fused [concat + Conv3x3+BN+ReLU + Conv3x3+BN+ReLU]
# Each 3x3 conv = 9 matmuls over contiguous row windows of a flattened,
# zero-padded VMEM slab (pad rows/cols never touch HBM; the conv1 output feeds
# conv2 straight from VMEM).
# -----------------------------------------------------------------------------
def _double_conv3x3_kernel(x2_ref, x1_ref, wa_ref, wb_ref, s1_ref, t1_ref,
                           w2_ref, s2_ref, t2_ref, o_ref,
                           xa_pad, xb_pad, mid_pad):
    # x2_ref: (1, H, W, Ca)   skip connection
    # x1_ref: (1, H, W, Cb)   upsampled branch
    # wa/wb : (3, 3, Ca/Cb, Cm)  first conv, split along input channels
    # w2    : (3, 3, Cm, Cm)     second conv
    # s*/t* : (1, Cm)            folded BatchNorm scale / shift (incl. conv bias)
    # o_ref : (1, H, W, Cm)
    # scratch: (H+3, W+2, C) zero-padded slabs (1 top row, 2 bottom rows, 1 col
    #          each side; the extra bottom row keeps the flat row windows of the
    #          junk columns in-bounds).
    _, H, W, Cm = o_ref.shape
    pW = W + 2
    M = H * pW          # accumulator rows; columns j in {W, W+1} are junk

    # ---- in-kernel zero padding (no jnp.pad HBM pass) ----
    xa_pad[...] = jnp.zeros_like(xa_pad)
    xb_pad[...] = jnp.zeros_like(xb_pad)
    mid_pad[...] = jnp.zeros_like(mid_pad)
    xa_pad[pl.ds(1, H), pl.ds(1, W), :] = x2_ref[0]
    xb_pad[pl.ds(1, H), pl.ds(1, W), :] = x1_ref[0]

    def accum_conv3x3(xp_flat, w_ref, acc):
        # xp_flat: ((H+3)*pW, Cin). Shift (dy, dx) == contiguous row window
        # starting at dy*pW + dx -> no strided (H, W)-plane gather copies.
        for dy in range(3):
            for dx in range(3):
                off = dy * pW + dx
                acc = acc + jnp.dot(xp_flat[off:off + M, :], w_ref[dy, dx],
                                    preferred_element_type=jnp.float32)
        return acc

    # ---- conv1 (+ fused channel concat) + BN1 + ReLU ----
    xa_f = xa_pad[...].reshape((H + 3) * pW, xa_pad.shape[-1])
    xb_f = xb_pad[...].reshape((H + 3) * pW, xb_pad.shape[-1])
    acc1 = jnp.zeros((M, Cm), jnp.float32)
    acc1 = accum_conv3x3(xa_f, wa_ref, acc1)
    acc1 = accum_conv3x3(xb_f, wb_ref, acc1)
    y1 = acc1.reshape(H, pW, Cm)[:, :W, :]          # drop the 2 junk columns
    y1 = jnp.maximum(y1 * s1_ref[0] + t1_ref[0], 0.0)

    # ---- conv2 + BN2 + ReLU (intermediate never leaves VMEM) ----
    mid_pad[pl.ds(1, H), pl.ds(1, W), :] = y1.astype(mid_pad.dtype)
    mid_f = mid_pad[...].reshape((H + 3) * pW, Cm)
    acc2 = accum_conv3x3(mid_f, w2_ref, jnp.zeros((M, Cm), jnp.float32))
    y2 = acc2.reshape(H, pW, Cm)[:, :W, :]
    y2 = jnp.maximum(y2 * s2_ref[0] + t2_ref[0], 0.0)
    o_ref[0] = y2.astype(o_ref.dtype)


def fused_double_conv_bn_relu(x2_nhwc, x1_nhwc, wa, wb, s1, t1, w2, s2, t2):
    """x2: (N, H, W, Ca); x1: (N, H, W, Cb); returns (N, H, W, Cm)."""
    N, H, W, Ca = x2_nhwc.shape
    Cb = x1_nhwc.shape[-1]
    Cm = wa.shape[-1]
    return pl.pallas_call(
        _double_conv3x3_kernel,
        out_shape=jax.ShapeDtypeStruct((N, H, W, Cm), x2_nhwc.dtype),
        grid_spec=pltpu.PrefetchScalarGridSpec(
            num_scalar_prefetch=0,
            grid=(N,),
            in_specs=[
                pl.BlockSpec((1, H, W, Ca), lambda n: (n, 0, 0, 0)),
                pl.BlockSpec((1, H, W, Cb), lambda n: (n, 0, 0, 0)),
                pl.BlockSpec((3, 3, Ca, Cm), lambda n: (0, 0, 0, 0)),
                pl.BlockSpec((3, 3, Cb, Cm), lambda n: (0, 0, 0, 0)),
                pl.BlockSpec((1, Cm), lambda n: (0, 0)),
                pl.BlockSpec((1, Cm), lambda n: (0, 0)),
                pl.BlockSpec((3, 3, Cm, Cm), lambda n: (0, 0, 0, 0)),
                pl.BlockSpec((1, Cm), lambda n: (0, 0)),
                pl.BlockSpec((1, Cm), lambda n: (0, 0)),
            ],
            out_specs=pl.BlockSpec((1, H, W, Cm), lambda n: (n, 0, 0, 0)),
            scratch_shapes=[
                pltpu.VMEM((H + 3, W + 2, Ca), x2_nhwc.dtype),
                pltpu.VMEM((H + 3, W + 2, Cb), x1_nhwc.dtype),
                pltpu.VMEM((H + 3, W + 2, Cm), x2_nhwc.dtype),
            ],
        ),
        compiler_params=pltpu.CompilerParams(dimension_semantics=("parallel",)),
    )(x2_nhwc, x1_nhwc, wa, wb, s1.reshape(1, Cm), t1.reshape(1, Cm),
      w2, s2.reshape(1, Cm), t2.reshape(1, Cm))


# -----------------------------------------------------------------------------
# Parameters (deterministic init, PyTorch-like shapes)
# -----------------------------------------------------------------------------
def init_params(key, in_ch, out_ch):
    ks = jax.random.split(key, 14)

    def u(k, shape, fan_in):
        bound = 1.0 / (fan_in ** 0.5)
        return jax.random.uniform(k, shape, jnp.float32, -bound, bound)

    c0 = in_ch + out_ch
    return {
        # ConvTranspose2d(in_ch, in_ch, 2, stride=2): weight (Cin, Cout, 2, 2)
        "up_w": u(ks[0], (in_ch, in_ch, 2, 2), in_ch * 4),
        "up_b": u(ks[1], (in_ch,), in_ch * 4),
        # Conv2d(in_ch+out_ch, out_ch, 3): weight (Cout, Cin, 3, 3)
        "c1_w": u(ks[2], (out_ch, c0, 3, 3), c0 * 9),
        "c1_b": u(ks[3], (out_ch,), c0 * 9),
        "bn1_g": jax.random.uniform(ks[4], (out_ch,), jnp.float32, 0.5, 1.5),
        "bn1_b": u(ks[5], (out_ch,), 1.0),
        "bn1_m": u(ks[6], (out_ch,), 1.0),
        "bn1_v": jax.random.uniform(ks[7], (out_ch,), jnp.float32, 0.5, 1.5),
        "c2_w": u(ks[8], (out_ch, out_ch, 3, 3), out_ch * 9),
        "c2_b": u(ks[9], (out_ch,), out_ch * 9),
        "bn2_g": jax.random.uniform(ks[10], (out_ch,), jnp.float32, 0.5, 1.5),
        "bn2_b": u(ks[11], (out_ch,), 1.0),
        "bn2_m": u(ks[12], (out_ch,), 1.0),
        "bn2_v": jax.random.uniform(ks[13], (out_ch,), jnp.float32, 0.5, 1.5),
    }


def _fold_bn(conv_b, g, b, m, v, eps):
    scale = g / jnp.sqrt(v + eps)
    shift = b - m * scale + conv_b * scale
    return scale, shift


# -----------------------------------------------------------------------------
# UpConv2d forward (matches the PyTorch module's list-based calling convention)
# -----------------------------------------------------------------------------
def upconv2d_forward(xs_ss, params, eps=1e-5, compute_dtype=None):
    xs, ss = xs_ss
    xs = list(xs)
    x1 = xs.pop()  # NCHW: (N, in_ch, H, W)
    x2 = xs.pop()  # NCHW: (N, out_ch, 2H, 2W)
    in_ch = x1.shape[1]
    out_ch = x2.shape[1]

    x1_nhwc = jnp.transpose(x1, (0, 2, 3, 1))
    x2_nhwc = jnp.transpose(x2, (0, 2, 3, 1))

    # torch ConvTranspose2d weight (Cin, Cout, kh, kw) -> (Cin, kh*kw*Cout),
    # columns ordered (a, b, co) to match the (N, H, 2, W, 2*Cout) out layout.
    w_up4 = jnp.transpose(params["up_w"], (0, 2, 3, 1)).reshape(in_ch, 4 * in_ch)
    b_up4 = jnp.tile(params["up_b"], 4)

    # torch Conv2d weight (Cout, Cin, kh, kw) -> (kh, kw, Cin, Cout); split the
    # first conv along Cin = [x2 channels | upsampled-x1 channels] so the
    # channel concat is fused into the kernel (never materialized in HBM).
    w1 = jnp.transpose(params["c1_w"], (2, 3, 1, 0))
    w1a, w1b = w1[:, :, :out_ch, :], w1[:, :, out_ch:, :]
    w2 = jnp.transpose(params["c2_w"], (2, 3, 1, 0))
    s1, t1 = _fold_bn(params["c1_b"], params["bn1_g"], params["bn1_b"],
                      params["bn1_m"], params["bn1_v"], eps)
    s2, t2 = _fold_bn(params["c2_b"], params["bn2_g"], params["bn2_b"],
                      params["bn2_m"], params["bn2_v"], eps)

    if compute_dtype is not None:   # e.g. jnp.bfloat16 on v6e/v7x (f32 accum kept)
        x1_nhwc = x1_nhwc.astype(compute_dtype)
        x2_nhwc = x2_nhwc.astype(compute_dtype)
        w_up4, w1a, w1b, w2 = (a.astype(compute_dtype)
                               for a in (w_up4, w1a, w1b, w2))

    x1_up = conv_transpose2x2_s2(x1_nhwc, w_up4, b_up4)   # (N, 2H, 2W, in_ch)
    y = fused_double_conv_bn_relu(x2_nhwc, x1_up, w1a, w1b, s1, t1, w2, s2, t2)

    xs.append(jnp.transpose(y, (0, 3, 1, 2)))  # back to NCHW
    return (xs, ss)


# -----------------------------------------------------------------------------
# Pure-JAX reference (NCHW, mirrors the PyTorch forward) for validation
# -----------------------------------------------------------------------------
def reference_forward(xs_ss, params, eps=1e-5):
    hi = jax.lax.Precision.HIGHEST
    xs, ss = xs_ss
    xs = list(xs)
    x1 = xs.pop()
    x2 = xs.pop()
    N, Cin, H, W = x1.shape
    Cout_up = params["up_w"].shape[1]
    y = jnp.einsum("ncij,cdab->ndiajb", x1, params["up_w"], precision=hi)
    y = y.reshape(N, Cout_up, 2 * H, 2 * W) + params["up_b"][None, :, None, None]
    x = jnp.concatenate([x2, y], axis=1)

    def conv_bn_relu(x, w, b, g, beta, m, v):
        z = jax.lax.conv_general_dilated(
            x, w, (1, 1), ((1, 1), (1, 1)),
            dimension_numbers=("NCHW", "OIHW", "NCHW"), precision=hi)
        z = z + b[None, :, None, None]
        z = ((z - m[None, :, None, None]) / jnp.sqrt(v + eps)[None, :, None, None]
             * g[None, :, None, None] + beta[None, :, None, None])
        return jnp.maximum(z, 0.0)

    x = conv_bn_relu(x, params["c1_w"], params["c1_b"], params["bn1_g"],
                     params["bn1_b"], params["bn1_m"], params["bn1_v"])
    x = conv_bn_relu(x, params["c2_w"], params["c2_b"], params["bn2_g"],
                     params["bn2_b"], params["bn2_m"], params["bn2_v"])
    xs.append(x)
    return (xs, ss)


if __name__ == "__main__":
    key = jax.random.PRNGKey(0)
    in_ch, out_ch = 8, 4
    N, H, W = 2, 8, 8  # x1 spatial; x2 (skip connection) is 2x larger

    kp, k1, k2 = jax.random.split(key, 3)
    params = init_params(kp, in_ch, out_ch)
    x1 = jax.random.normal(k1, (N, in_ch, H, W), jnp.float32)
    x2 = jax.random.normal(k2, (N, out_ch, 2 * H, 2 * W), jnp.float32)

    ss = None
    out_xs, out_ss = upconv2d_forward(([x2, x1], ss), params)
    out = jax.block_until_ready(out_xs[-1])

    ref_xs, _ = reference_forward(([x2, x1], ss), params)
    ref = jax.block_until_ready(ref_xs[-1])

    assert out.shape == (N, out_ch, 2 * H, 2 * W), out.shape
    err = float(jnp.max(jnp.abs(out - ref)))
    if err < 2e-3:
        print("KERNEL_OK")
    else:
        print(f"MISMATCH max_err={err}")
</pallas_src>

<mosaic_0001>
module attributes {stable_mosaic.version = 11 : i64} {
  func.func @_upconv2x2_kernel(%arg0: i32, %arg1: memref<1x8x8x8xf32, #tpu.memory_space<vmem>>, %arg2: memref<8x32xf32, #tpu.memory_space<vmem>>, %arg3: memref<1x32xf32, #tpu.memory_space<vmem>>, %arg4: memref<1x8x2x8x16xf32, #tpu.memory_space<vmem>>) attributes {dimension_semantics = [#tpu.dimension_semantics<parallel>], iteration_bounds = array<i64: 2>, scalar_prefetch = 0 : i64, scratch_operands = 0 : i64, tpu.core_type = #tpu.core_type<tc>, window_params = [{transform_indices = @transform_0, window_bounds = array<i64: 1, 8, 8, 8>}, {pipeline_mode = #tpu.pipeline_mode<synchronous>, transform_indices = @transform_1, window_bounds = array<i64: 8, 32>}, {pipeline_mode = #tpu.pipeline_mode<synchronous>, transform_indices = @transform_2, window_bounds = array<i64: 1, 32>}, {transform_indices = @transform_3, window_bounds = array<i64: 1, 8, 2, 8, 16>}]} {
    %c0 = arith.constant 0 : index
    %c0_0 = arith.constant 0 : index
    %c0_1 = arith.constant 0 : index
    %c0_2 = arith.constant 0 : index
    %0 = vector.load %arg1[%c0, %c0_0, %c0_1, %c0_2] : memref<1x8x8x8xf32, #tpu.memory_space<vmem>>, vector<1x8x8x8xf32>
    %1 = vector.shape_cast %0 : vector<1x8x8x8xf32> to vector<8x8x8xf32>
    %2 = vector.shape_cast %1 : vector<8x8x8xf32> to vector<64x8xf32>
    %c0_3 = arith.constant 0 : index
    %c0_4 = arith.constant 0 : index
    %3 = vector.load %arg2[%c0_3, %c0_4] : memref<8x32xf32, #tpu.memory_space<vmem>>, vector<8x32xf32>
    %cst = arith.constant dense<0.000000e+00> : vector<64x32xf32>
    %4 = tpu.matmul %2, %3, %cst {dimension_numbers = #tpu.dot_dimension_numbers<[1], [0], [0], [1], [0, 0, 1, 1], [], []>} : vector<64x8xf32>, vector<8x32xf32>, vector<64x32xf32> -> vector<64x32xf32>
    %c0_5 = arith.constant 0 : index
    %c0_6 = arith.constant 0 : index
    %5 = vector.load %arg3[%c0_5, %c0_6] : memref<1x32xf32, #tpu.memory_space<vmem>>, vector<1x32xf32>
    %6 = vector.shape_cast %5 : vector<1x32xf32> to vector<32xf32>
    %7 = vector.shape_cast %6 : vector<32xf32> to vector<1x32xf32>
    %8 = vector.broadcast %7 : vector<1x32xf32> to vector<64x32xf32>
    %9 = arith.addf %4, %8 : vector<64x32xf32>
    %10 = vector.shape_cast %9 : vector<64x32xf32> to vector<8x8x32xf32>
    %11 = vector.extract_strided_slice %10 {offsets = [0, 0, 0], sizes = [8, 8, 16], strides = [1, 1, 1]} : vector<8x8x32xf32> to vector<8x8x16xf32>
    %c0_7 = arith.constant 0 : index
    %c0_8 = arith.constant 0 : index
    %c0_9 = arith.constant 0 : index
    %c0_10 = arith.constant 0 : index
    %c0_11 = arith.constant 0 : index
    %12 = vector.load %arg4[%c0_7, %c0_8, %c0_9, %c0_10, %c0_11] : memref<1x8x2x8x16xf32, #tpu.memory_space<vmem>>, vector<1x8x1x8x16xf32>
    %13 = vector.shape_cast %12 : vector<1x8x1x8x16xf32> to vector<8x8x16xf32>
    %14 = vector.shape_cast %11 : vector<8x8x16xf32> to vector<1x8x1x8x16xf32>
    tpu.vector_store %arg4[%c0_7, %c0_8, %c0_9, %c0_10, %c0_11], %14 {strides = array<i32>} : memref<1x8x2x8x16xf32, #tpu.memory_space<vmem>>, vector<1x8x1x8x16xf32>,
    %15 = vector.extract_strided_slice %10 {offsets = [0, 0, 16], sizes = [8, 8, 16], strides = [1, 1, 1]} : vector<8x8x32xf32> to vector<8x8x16xf32>
    %c0_12 = arith.constant 0 : index
    %c0_13 = arith.constant 0 : index
    %c1 = arith.constant 1 : index
    %c0_14 = arith.constant 0 : index
    %c0_15 = arith.constant 0 : index
    %16 = vector.load %arg4[%c0_12, %c0_13, %c1, %c0_14, %c0_15] : memref<1x8x2x8x16xf32, #tpu.memory_space<vmem>>, vector<1x8x1x8x16xf32>
    %17 = vector.shape_cast %16 : vector<1x8x1x8x16xf32> to vector<8x8x16xf32>
    %18 = vector.shape_cast %15 : vector<8x8x16xf32> to vector<1x8x1x8x16xf32>
    tpu.vector_store %arg4[%c0_12, %c0_13, %c1, %c0_14, %c0_15], %18 {strides = array<i32>} : memref<1x8x2x8x16xf32, #tpu.memory_space<vmem>>, vector<1x8x1x8x16xf32>,
    return
  }
  func.func @transform_0(%arg0: i32) -> (i32, i32, i32, i32) {
    %c0_i32 = arith.constant 0 : i32
    %c0_i32_0 = arith.constant 0 : i32
    %c0_i32_1 = arith.constant 0 : i32
    %c0_i32_2 = arith.constant 0 : i32
    return %arg0, %c0_i32, %c0_i32_0, %c0_i32_1 : i32, i32, i32, i32
  }
  func.func @transform_1(%arg0: i32) -> (i32, i32) {
    %c0_i32 = arith.constant 0 : i32
    %c0_i32_0 = arith.constant 0 : i32
    %c0_i32_1 = arith.constant 0 : i32
    return %c0_i32, %c0_i32_0 : i32, i32
  }
  func.func @transform_2(%arg0: i32) -> (i32, i32) {
    %c0_i32 = arith.constant 0 : i32
    %c0_i32_0 = arith.constant 0 : i32
    %c0_i32_1 = arith.constant 0 : i32
    return %c0_i32, %c0_i32_0 : i32, i32
  }
  func.func @transform_3(%arg0: i32) -> (i32, i32, i32, i32, i32) {
    %c0_i32 = arith.constant 0 : i32
    %c0_i32_0 = arith.constant 0 : i32
    %c0_i32_1 = arith.constant 0 : i32
    %c0_i32_2 = arith.constant 0 : i32
    %c0_i32_3 = arith.constant 0 : i32
    return %arg0, %c0_i32, %c0_i32_0, %c0_i32_1, %c0_i32_2 : i32, i32, i32, i32, i32
  }
}

</mosaic_0001>

<llo_original>
// kernel: tpu_custom_call.1
$region0: #{tpu_custom_call.1}
  #allocation0 [shape = 'u32[]', space=smem, size = 0x4, offset = 0x4, fixed_abs, tag = 'smem constant byte address 0x4 - core index']
  #allocation1 [shape = 'u32[144,128]{1,0:T(1,128)}', space=vmem, size = 0x12000, scoped, tag = 'internal scratch']
  %s0 = inlined_call_operand.hbm [shape: f32[2,8,8,8], index: 0, kind: input, shape index: {}]
  %s1 = inlined_call_operand.hbm [shape: f32[8,32], index: 1, kind: input, shape index: {}]
  %s2 = inlined_call_operand.vmem [shape: f32[1,32], index: 2, kind: input, shape index: {}]
  %s3 = inlined_call_operand.hbm [shape: f32[2,8,2,8,16], index: 3, kind: output, shape index: {}]
  %s4 = sld [smem:[#allocation0]]
  $region53: #{tpu_custom_call.1} parent=0
    _
  %s6 = ssub.s32 1, %s4
  %s7 = scalar_select 0, %s6, %s4
  $region1: #{tpu_custom_call.1} parent=0
    #allocation2 [shape = 'u8[65536]{0}', space=vmem, size = 0x10000, scoped, tag = 'input window, operand 0']
    #allocation3 [shape = 's32[2]{0}', space=sflag, size = 0x8, scoped, tag = 'scoped memory for tpu_custom_call.1']
    #allocation4 [shape = 's32[2]{0}', space=sflag, size = 0x8, scoped, tag = 'scoped memory for tpu_custom_call.1']
    #allocation5 [shape = 'u8[4096]{0}', space=vmem, size = 0x1000, scoped, tag = 'input window, operand 1, single buffered']
    #allocation6 [shape = 's32[1]{0}', space=sflag, size = 0x4, scoped, tag = 'scoped memory for tpu_custom_call.1']
    #allocation7 [shape = 'u8[131072]{0}', space=vmem, size = 0x20000, scoped, tag = 'output window, operand 0']
    %8 = vsyncpa [#allocation3], 0
    %s9 = scalar_lea.sflag [#allocation3], 1
    %10 = vsyncpa %s9, 0
    %11 = vsyncpa [#allocation6], 0
    %12 = vsyncpa [#allocation4], 0
    %s13 = scalar_lea.sflag [#allocation4], 1
    %14 = vsyncpa %s13, 0
    loop: start=0, step=1, limit=4
    $region2: #{tpu_custom_call.1} parent=1 // loop_pre_header
      _
    $region3: #{tpu_custom_call.1} parent=1 // loop_header
      %s16 = sphi 0, %s20
      %p17 = scmp.ge.s32.totalorder %s16, 4
      %s26 = sphi 0, %s28
      %s29 = sphi 0, %s26
      %s30 = sphi 0, %s29
      %s46 = sphi 0, %s30
      %s50 = sphi 0, %s50
      %s52 = sphi 0, %s50
      %s53 = sphi 0, %s52
      %s67 = sphi 0, %s53
      %s71 = sphi 0, %s71
      %s73 = sphi 0, %s71
      %s74 = sphi 0, %s73
      %s88 = sphi 0, %s74
      %s94 = sphi 0, %s96
      %s97 = sphi 0, %s94
      %s98 = sphi 0, %s97
      %s114 = sphi 0, %s98
    $region4: #{tpu_custom_call.1} parent=1 // loop_header_branch
      %19 = sbr.rel (%p17) target = $region8
    $region5: #{tpu_custom_call.1} parent=1 // loop_body
      %s21 = ssub.s32 %s16, 1
      %s22 = ssub.s32 %s16, 2
      %s23 = sadd.s32 %s16, 1
      %s24 = ssub.s32 %s16, %s23
      %p25 = scmp.eq.s32.totalorder %s24, 0
      %s27 = sadd.s32 %s26, 1
      %s28 = scalar_select %p25, %s26, %s27
      %p31 = pneg %p25
      %p32 = scmp.eq.s32.totalorder %s16, 1
      %p33 = por %p31, %p32
      %p34 = scmp.ne.s32.totalorder %s26, %s29
      %p35 = scmp.eq.s32.totalorder %s16, 0
      %p36 = por %p34, %p35
      %p37 = scmp.ne.s32.totalorder %s26, %s29
      %p38 = scmp.eq.s32.totalorder %s21, 1
      %p39 = por %p37, %p38
      %p40 = scmp.ne.s32.totalorder %s29, %s30
      %p41 = scmp.eq.s32.totalorder %s21, 0
      %p42 = por %p40, %p41
      %p43 = scmp.ne.s32.totalorder %s29, %s30
      %p44 = scmp.eq.s32.totalorder %s22, 1
      %p45 = por %p43, %p44
      %p47 = scmp.ne.s32.totalorder %s30, %s46
      %p48 = scmp.eq.s32.totalorder %s22, 0
      %p49 = por %p47, %p48
      %s51 = sadd.s32 %s50, 1
      %p54 = scmp.eq.s32.totalorder %s16, 1
      %p55 = scmp.ne.s32.totalorder %s50, %s52
      %p56 = scmp.eq.s32.totalorder %s16, 0
      %p57 = por %p55, %p56
      %p58 = scmp.ne.s32.totalorder %s50, %s52
      %p59 = scmp.eq.s32.totalorder %s21, 1
      %p60 = por %p58, %p59
      %p61 = scmp.ne.s32.totalorder %s52, %s53
      %p62 = scmp.eq.s32.totalorder %s21, 0
      %p63 = por %p61, %p62
      %p64 = scmp.ne.s32.totalorder %s52, %s53
      %p65 = scmp.eq.s32.totalorder %s22, 1
      %p66 = por %p64, %p65
      %p68 = scmp.ne.s32.totalorder %s53, %s67
      %p69 = scmp.eq.s32.totalorder %s22, 0
      %p70 = por %p68, %p69
      %s72 = sadd.s32 %s71, 1
      %p75 = scmp.eq.s32.totalorder %s16, 1
      %p76 = scmp.ne.s32.totalorder %s71, %s73
      %p77 = scmp.eq.s32.totalorder %s16, 0
      %p78 = por %p76, %p77
      %p79 = scmp.ne.s32.totalorder %s71, %s73
      %p80 = scmp.eq.s32.totalorder %s21, 1
      %p81 = por %p79, %p80
      %p82 = scmp.ne.s32.totalorder %s73, %s74
      %p83 = scmp.eq.s32.totalorder %s21, 0
      %p84 = por %p82, %p83
      %p85 = scmp.ne.s32.totalorder %s73, %s74
      %p86 = scmp.eq.s32.totalorder %s22, 1
      %p87 = por %p85, %p86
      %p89 = scmp.ne.s32.totalorder %s74, %s88
      %p90 = scmp.eq.s32.totalorder %s22, 0
      %p91 = por %p89, %p90
      %s92 = ssub.s32 %s16, %s23
      %p93 = scmp.eq.s32.totalorder %s92, 0
      %s95 = sadd.s32 %s94, 1
      %s96 = scalar_select %p93, %s94, %s95
      %p99 = pneg %p93
      %p100 = scmp.eq.s32.totalorder %s16, 1
      %p101 = por %p99, %p100
      %p102 = scmp.ne.s32.totalorder %s94, %s97
      %p103 = scmp.eq.s32.totalorder %s16, 0
      %p104 = por %p102, %p103
      %p105 = scmp.ne.s32.totalorder %s94, %s97
      %p106 = scmp.eq.s32.totalorder %s21, 1
      %p107 = por %p105, %p106
      %p108 = scmp.ne.s32.totalorder %s97, %s98
      %p109 = scmp.eq.s32.totalorder %s21, 0
      %p110 = por %p108, %p109
      %p111 = scmp.ne.s32.totalorder %s97, %s98
      %p112 = scmp.eq.s32.totalorder %s22, 1
      %p113 = por %p111, %p112
      %p115 = scmp.ne.s32.totalorder %s98, %s114
      %p116 = scmp.eq.s32.totalorder %s22, 0
      %p117 = por %p115, %p116
      %p118 = scmp.le.s32.totalorder 1, %s16
      %p119 = scmp.lt.s32.totalorder %s16, 3
      %p120 = pnand %p118, %p119
      %p121 = pneg %p120
      // Predicated region
      $region9: #{tpu_custom_call.1} parent=5 // pred_check
        _
      $region10: #{tpu_custom_call.1} parent=5 // pred_check_branch
        %123 = sbr.rel (%p120) target = $region12
      $region11: #{tpu_custom_call.1} parent=5 // pred_region
        %s124 = ssub.s32 %s16, 1
        // Predicated region
        $region13: #{tpu_custom_call.1} parent=11 // pred_check
          %p125 = pneg %p63
        $region14: #{tpu_custom_call.1} parent=11 // pred_check_branch
          %127 = sbr.rel (%p125) target = $region16
        $region15: #{tpu_custom_call.1} parent=11 // pred_region
          %s129 = ssub.s32 128, 128
          %130 = vsyncadd [#allocation6], %s129
          %s132 = sshll.u32 [#allocation5], 4
          %s133 = int_to_ptr.vmem [resolvable:$true] %s132
          %135 = dma.hbm_to_vmem [thread:$0]  %s1, 128, %s133, [#allocation6]
        $region16: #{tpu_custom_call.1} parent=11 // pred_fallthru
          _
        // Predicated region
        $region17: #{tpu_custom_call.1} parent=11 // pred_check
          %p136 = pneg %p84
        $region18: #{tpu_custom_call.1} parent=11 // pred_check_branch
          %138 = sbr.rel (%p136) target = $region20
        $region19: #{tpu_custom_call.1} parent=11 // pred_region
          _
        $region20: #{tpu_custom_call.1} parent=11 // pred_fallthru
          _
      $region12: #{tpu_custom_call.1} parent=5 // pred_fallthru
        _
      %p139 = scmp.lt.s32.totalorder %s16, 2
      // Predicated region
      $region21: #{tpu_custom_call.1} parent=5 // pred_check
        %p140 = pneg %p139
      $region22: #{tpu_custom_call.1} parent=5 // pred_check_branch
        %142 = sbr.rel (%p140) target = $region24
      $region23: #{tpu_custom_call.1} parent=5 // pred_region
        // Predicated region
        $region25: #{tpu_custom_call.1} parent=23 // pred_check
          %p143 = pneg %p36
        $region26: #{tpu_custom_call.1} parent=23 // pred_check_branch
          %145 = sbr.rel (%p143) target = $region28
        $region27: #{tpu_custom_call.1} parent=23 // pred_region
          %s146 = sand.u32 %s26, 1
          %s147 = scalar_lea.sflag [#allocation3], %s146
          %s148 = sand.u32 %s26, 1
          %s149 = smul.addr %s148, 64
          %s150 = scalar_lea.vmem [#allocation2], %s149
          %s152 = ssub.s32 1024, 1024
          %153 = vsyncadd %s147, %s152
          %s154 = smul.addr %s16, 8
          %s155 = smul.addr %s154, 128
          %s156 = scalar_lea.hbm %s0, %s155
          %s157 = sshll.u32 %s150, 4
          %s158 = int_to_ptr.vmem [resolvable:$true] %s157
          %163 = dma.hbm_to_vmem [thread:$0]  %s156, 1024, %s158, %s147, 128, 128, 8
        $region28: #{tpu_custom_call.1} parent=23 // pred_fallthru
          _
      $region24: #{tpu_custom_call.1} parent=5 // pred_fallthru
        _
      %p164 = scmp.le.s32.totalorder 1, %s16
      %p165 = scmp.lt.s32.totalorder %s16, 3
      %p166 = pnand %p164, %p165
      %p167 = pneg %p166
      // Predicated region
      $region29: #{tpu_custom_call.1} parent=5 // pred_check
        _
      $region30: #{tpu_custom_call.1} parent=5 // pred_check_branch
        %169 = sbr.rel (%p166) target = $region32
      $region31: #{tpu_custom_call.1} parent=5 // pred_region
        %s170 = ssub.s32 %s16, 1
        %s171 = sand.u32 %s29, 1
        %s172 = scalar_lea.sflag [#allocation3], %s171
        %s173 = sand.u32 %s29, 1
        %s174 = smul.addr %s173, 64
        %s175 = scalar_lea.vmem [#allocation2], %s174
        // Predicated region
        $region33: #{tpu_custom_call.1} parent=31 // pred_check
          %p176 = pneg %p42
        $region34: #{tpu_custom_call.1} parent=31 // pred_check_branch
          %178 = sbr.rel (%p176) target = $region36
        $region35: #{tpu_custom_call.1} parent=31 // pred_region
          %179 = dma.done %s172, 1024
        $region36: #{tpu_custom_call.1} parent=31 // pred_fallthru
          _
        // Predicated region
        $region37: #{tpu_custom_call.1} parent=31 // pred_check
          %p180 = pneg %p63
        $region38: #{tpu_custom_call.1} parent=31 // pred_check_branch
          %182 = sbr.rel (%p180) target = $region40
        $region39: #{tpu_custom_call.1} parent=31 // pred_region
          %183 = dma.done [#allocation6], 128
        $region40: #{tpu_custom_call.1} parent=31 // pred_fallthru
          _
        %s184 = sand.u32 %s29, 1
        %s185 = scalar_lea.sflag [#allocation3], %s184
        %s186 = sand.u32 %s29, 1
        %s187 = smul.addr %s186, 64
        %s188 = scalar_lea.vmem [#allocation2], %s187
        %p189 = pneg %p42
        %p190 = pneg %p39
        %p191 = pneg %p63
        %p192 = pneg %p60
        %p193 = pneg %p84
        %p194 = pneg %p81
        %p195 = pneg %p110
        %p196 = pneg %p107
        %s197 = sand.u32 %s97, 1
        %s198 = scalar_lea.sflag [#allocation4], %s197
        %s199 = sand.u32 %s97, 1
        %s200 = smul.addr %s199, 128
        %s201 = scalar_lea.vmem [#allocation7], %s200
        %v202 = vld [vmem:[%s175] sm:$0xff]
        %v203 = vld [vmem:[%s175 + $0x8] sm:$0xff]
        %v204 = vld [vmem:[%s175 + $0x10] sm:$0xff]
        %v205 = vld [vmem:[%s175 + $0x18] sm:$0xff]
        %v206 = vld [vmem:[%s175 + $0x20] sm:$0xff]
        %v207 = vld [vmem:[%s175 + $0x28] sm:$0xff]
        %v208 = vld [vmem:[%s175 + $0x30] sm:$0xff]
        %v209 = vld [vmem:[%s175 + $0x38] sm:$0xff]
        %v210 = vld [vmem:[#allocation5] sm:$0xff]
        %v211 = vld [vmem:[%s2] sm:$0x1]
        %v213 = vlaneseq
        %v214 = vshrl.u32 %v213, 7
        %v215 = vsub.s32 0, %v214
        %v216 = vrot.slane %v211, %v215
        %vm218 = vcmask 64512
        %v220 = vsel %vm218, %v202, 0
        %v223 = vsel %vm218, %v203, 0
        %v226 = vsel %vm218, %v204, 0
        %v229 = vsel %vm218, %v205, 0
        %v232 = vsel %vm218, %v206, 0
        %v235 = vsel %vm218, %v207, 0
        %v238 = vsel %vm218, %v208, 0
        %v241 = vsel %vm218, %v209, 0
        %243 = vmatprep.subr.mxu0 0.0
        %244 = vmatpush1.msra.mxu0 %v210
        %245 = vmatprep.subr.mxu0 0.0
        %246 = vmatpush1.msra.mxu0 0.0
        %247 = vmatprep.subr.mxu0 0.0
        %248 = vmatpush1.msra.mxu0 0.0
        %249 = vmatprep.subr.mxu0 0.0
        %250 = vmatpush1.msra.mxu0 0.0
        %251 = vmatprep.subr.mxu0 0.0
        %252 = vmatpush1.msra.mxu0 0.0
        %253 = vmatprep.subr.mxu0 0.0
        %254 = vmatpush1.msra.mxu0 0.0
        %255 = vmatprep.subr.mxu0 0.0
        %256 = vmatpush1.msra.mxu0 0.0
        %257 = vmatprep.subr.mxu0 0.0
        %258 = vmatpush1.msra.mxu0 0.0
        %259 = vmatprep.subr.mxu0 0.0
        %260 = vmatpush1.msra.mxu0 0.0
        %261 = vmatprep.subr.mxu0 0.0
        %262 = vmatpush1.msra.mxu0 0.0
        %263 = vmatprep.subr.mxu0 0.0
        %264 = vmatpush1.msra.mxu0 0.0
        %265 = vmatprep.subr.mxu0 0.0
        %266 = vmatpush1.msra.mxu0 0.0
        %267 = vmatprep.subr.mxu0 0.0
        %268 = vmatpush1.msra.mxu0 0.0
        %269 = vmatprep.subr.mxu0 0.0
        %270 = vmatpush1.msra.mxu0 0.0
        %271 = vmatprep.subr.mxu0 0.0
        %272 = vmatpush1.msra.mxu0 0.0
        %273 = vmatprep.subr.mxu0 0.0
        %274 = vmatpush1.msra.mxu0 0.0
        %275 = vmatprep.subr.mxu0 0.0
        %276 = vmatpush1.msra.mxu0 0.0
        %277 = vmatprep.subr.mxu0 0.0
        %278 = vmatpush1.msra.mxu0 0.0
        %279 = vmatprep.subr.mxu0 0.0
        %280 = vmatpush1.msra.mxu0 0.0
        %281 = vmatprep.subr.mxu0 0.0
        %282 = vmatpush1.msra.mxu0 0.0
        %283 = vmatprep.subr.mxu0 0.0
        %284 = vmatpush1.msra.mxu0 0.0
        %285 = vmatprep.subr.mxu0 0.0
        %286 = vmatpush1.msra.mxu0 0.0
        %287 = vmatprep.subr.mxu0 0.0
        %288 = vmatpush1.msra.mxu0 0.0
        %289 = vmatprep.subr.mxu0 0.0
        %290 = vmatpush1.msra.mxu0 0.0
        %291 = vmatprep.subr.mxu0 0.0
        %292 = vmatpush1.msra.mxu0 0.0
        %293 = vmatprep.subr.mxu0 0.0
        %294 = vmatpush1.msra.mxu0 0.0
        %295 = vmatprep.subr.mxu0 0.0
        %296 = vmatpush1.msra.mxu0 0.0
        %297 = vmatprep.subr.mxu0 0.0
        %298 = vmatpush1.msra.mxu0 0.0
        %299 = vmatprep.subr.mxu0 0.0
        %300 = vmatpush1.msra.mxu0 0.0
        %301 = vmatprep.subr.mxu0 0.0
        %302 = vmatpush1.msra.mxu0 0.0
        %303 = vmatprep.subr.mxu0 0.0
        %304 = vmatpush1.msra.mxu0 0.0
        %305 = vmatprep.subr.mxu0 0.0
        %306 = vmatpush1.msra.mxu0 0.0
        %307 = vmatprep.mubr.f32.mxu0 0.0
        %308 = vmatmul.mubr.f32.gmra.mrb[0].mxu0 %v220
        %v309 = vpop.f32.mrb[0].mxu0
        %v310 = vadd.f32 %v216, %v309
        %v311 = vpop.f32.mrb[0].mxu0
        %312 = vmatprep.mubr.f32.mxu0 0.0
        %313 = vmatmul.mubr.f32.gmra.mrb[0].mxu0 %v223
        %v314 = vpop.f32.mrb[0].mxu0
        %v315 = vadd.f32 %v216, %v314
        %v316 = vpop.f32.mrb[0].mxu0
        %317 = vmatprep.mubr.f32.mxu0 0.0
        %318 = vmatmul.mubr.f32.gmra.mrb[0].mxu0 %v226
        %v319 = vpop.f32.mrb[0].mxu0
        %v320 = vadd.f32 %v216, %v319
        %v321 = vpop.f32.mrb[0].mxu0
        %322 = vmatprep.mubr.f32.mxu0 0.0
        %323 = vmatmul.mubr.f32.gmra.mrb[0].mxu0 %v229
        %v324 = vpop.f32.mrb[0].mxu0
        %v325 = vadd.f32 %v216, %v324
        %v326 = vpop.f32.mrb[0].mxu0
        %327 = vmatprep.mubr.f32.mxu0 0.0
        %328 = vmatmul.mubr.f32.gmra.mrb[0].mxu0 %v232
        %v329 = vpop.f32.mrb[0].mxu0
        %v330 = vadd.f32 %v216, %v329
        %v331 = vpop.f32.mrb[0].mxu0
        %332 = vmatprep.mubr.f32.mxu0 0.0
        %333 = vmatmul.mubr.f32.gmra.mrb[0].mxu0 %v235
        %v334 = vpop.f32.mrb[0].mxu0
        %v335 = vadd.f32 %v216, %v334
        %v336 = vpop.f32.mrb[0].mxu0
        %337 = vmatprep.mubr.f32.mxu0 0.0
        %338 = vmatmul.mubr.f32.gmra.mrb[0].mxu0 %v238
        %v339 = vpop.f32.mrb[0].mxu0
        %v340 = vadd.f32 %v216, %v339
        %v341 = vpop.f32.mrb[0].mxu0
        %342 = vmatprep.mubr.f32.mxu0 0.0
        %343 = vmatmul.mubr.f32.gmra.mrb[0].mxu0 %v241
        %v344 = vpop.f32.mrb[0].mxu0
        %v345 = vadd.f32 %v216, %v344
        %v346 = vpop.f32.mrb[0].mxu0
        %347 = vdwg.mxu0
        %vm348 = vcmask 130048
        %349 = vst.msk [vmem:[%s201] sm:$0xff] %vm348, %v310
        %350 = vst.msk [vmem:[%s201 + $0x10] sm:$0xff] %vm348, %v315
        %351 = vst.msk [vmem:[%s201 + $0x20] sm:$0xff] %vm348, %v320
        %352 = vst.msk [vmem:[%s201 + $0x30] sm:$0xff] %vm348, %v325
        %353 = vst.msk [vmem:[%s201 + $0x40] sm:$0xff] %vm348, %v330
        %354 = vst.msk [vmem:[%s201 + $0x50] sm:$0xff] %vm348, %v335
        %355 = vst.msk [vmem:[%s201 + $0x60] sm:$0xff] %vm348, %v340
        %356 = vst.msk [vmem:[%s201 + $0x70] sm:$0xff] %vm348, %v345
        %365 = vrot.lane.b32.xlu0 %v310, 112
        %v366 = vpop.permute.xlu0 %365
        %367 = vrot.lane.b32.xlu0 %v315, 112
        %v368 = vpop.permute.xlu0 %367
        %369 = vrot.lane.b32.xlu0 %v320, 112
        %v370 = vpop.permute.xlu0 %369
        %371 = vrot.lane.b32.xlu0 %v325, 112
        %v372 = vpop.permute.xlu0 %371
        %373 = vrot.lane.b32.xlu0 %v330, 112
        %v374 = vpop.permute.xlu0 %373
        %375 = vrot.lane.b32.xlu0 %v335, 112
        %v376 = vpop.permute.xlu0 %375
        %377 = vrot.lane.b32.xlu0 %v340, 112
        %v378 = vpop.permute.xlu0 %377
        %379 = vrot.lane.b32.xlu0 %v345, 112
        %v380 = vpop.permute.xlu0 %379
        %s389 = scalar_lea.vmem %s201, 8 [#allocation7]
        %390 = vst.msk [vmem:[%s389] sm:$0xff] %vm348, %v366
        %391 = vst.msk [vmem:[%s389 + $0x10] sm:$0xff] %vm348, %v368
        %392 = vst.msk [vmem:[%s389 + $0x20] sm:$0xff] %vm348, %v370
        %393 = vst.msk [vmem:[%s389 + $0x30] sm:$0xff] %vm348, %v372
        %394 = vst.msk [vmem:[%s389 + $0x40] sm:$0xff] %vm348, %v374
        %395 = vst.msk [vmem:[%s389 + $0x50] sm:$0xff] %vm348, %v376
        %396 = vst.msk [vmem:[%s389 + $0x60] sm:$0xff] %vm348, %v378
        %397 = vst.msk [vmem:[%s389 + $0x70] sm:$0xff] %vm348, %v380
        %s398 = sand.u32 %s97, 1
        %s399 = scalar_lea.sflag [#allocation4], %s398
        %s400 = sand.u32 %s97, 1
        %s401 = smul.addr %s400, 128
        %s402 = scalar_lea.vmem [#allocation7], %s401
        // Predicated region
        $region41: #{tpu_custom_call.1} parent=31 // pred_check
          %p403 = pneg %p107
        $region42: #{tpu_custom_call.1} parent=31 // pred_check_branch
          %405 = sbr.rel (%p403) target = $region44
        $region43: #{tpu_custom_call.1} parent=31 // pred_region
          %s407 = ssub.s32 2048, 2048
          %408 = vsyncadd %s399, %s407
          %s409 = smul.addr %s21, 16
          %s410 = smul.addr %s409, 128
          %s411 = scalar_lea.hbm %s3, %s410
          %s412 = sshll.u32 %s402, 4
          %s413 = int_to_ptr.vmem [resolvable:$true] %s412
          %418 = dma.vmem_to_hbm [thread:$0]  %s413, 2048, %s411, %s399, 128, 128, 8
        $region44: #{tpu_custom_call.1} parent=31 // pred_fallthru
          _
      $region32: #{tpu_custom_call.1} parent=5 // pred_fallthru
        _
      %p419 = scmp.le.s32.totalorder 2, %s16
      // Predicated region
      $region45: #{tpu_custom_call.1} parent=5 // pred_check
        %p420 = pneg %p419
      $region46: #{tpu_custom_call.1} parent=5 // pred_check_branch
        %422 = sbr.rel (%p420) target = $region48
      $region47: #{tpu_custom_call.1} parent=5 // pred_region
        %s423 = ssub.s32 %s16, 2
        // Predicated region
        $region49: #{tpu_custom_call.1} parent=47 // pred_check
          %p424 = pneg %p113
        $region50: #{tpu_custom_call.1} parent=47 // pred_check_branch
          %426 = sbr.rel (%p424) target = $region52
        $region51: #{tpu_custom_call.1} parent=47 // pred_region
          %s427 = sand.u32 %s98, 1
          %s428 = scalar_lea.sflag [#allocation4], %s427
          %s429 = sand.u32 %s98, 1
          %s430 = smul.addr %s429, 128
          %s431 = scalar_lea.vmem [#allocation7], %s430
          %432 = dma.done %s428, 2048
        $region52: #{tpu_custom_call.1} parent=47 // pred_fallthru
          _
      $region48: #{tpu_custom_call.1} parent=5 // pred_fallthru
        _
    $region6: #{tpu_custom_call.1} parent=1 // loop_footer
      %s20 = sadd.s32 1, %s16
    $region7: #{tpu_custom_call.1} parent=1 // loop_footer_branch
      %15 = sbr.rel target = $region3
    $region8: #{tpu_custom_call.1} parent=1 // loop_exit
      _
    %433 = vsyncpa [#allocation3], 1
    %s434 = scalar_lea.sflag [#allocation3], 1
    %435 = vsyncpa %s434, 1
    %436 = vsyncpa [#allocation6], 1
    %437 = vsyncpa [#allocation4], 1
    %s438 = scalar_lea.sflag [#allocation4], 1
    %439 = vsyncpa %s438, 1

</llo_original>
